<compile_context>
chip_gen: v7x
topology: tpu7x:2x2x1
jax: 0.10.0
libtpu: 0.0.40
codegen_flags: <defaults>
</compile_context>

<pallas_src>
import functools

import jax
import jax.numpy as jnp
import numpy as np
from jax import lax
from jax.experimental import pallas as pl
from jax.experimental.pallas import tpu as pltpu

LANE = 128    # TPU lane width
TM_MAX = 512  # row-tile size: measured sweet spot (~85% of HBM roofline for mem-bound tiles)


def conv_silu_kernel(p_ref, w_ref, b_ref, o_ref):
    # p_ref: (tm, K)  w_ref: (K, OC_pad)  b_ref: (1, OC_pad)  o_ref: (tm, OC_pad)
    v1 = jnp.dot(p_ref[...], w_ref[...], preferred_element_type=jnp.float32)
    v1 = v1 + b_ref[...]                        # conv bias (broadcast over rows)
    v2 = jax.nn.sigmoid(v1)                     # torch.sigmoid(v1)
    o_ref[...] = (v1 * v2).astype(o_ref.dtype)  # v1 * v2  (SiLU)


def prepare_params(w, b, compute_dtype=jnp.float32):
    """One-time weight/bias prep (hoisted out of the per-call forward path).

    w: (OC, C, KH, KW), b: (OC,) ->
      w2: (K, OC_pad) with K = C*KH*KW unpadded, OC zero-padded to a lane multiple,
      b2: (1, OC_pad) in f32 (bias/accum stay f32 even if compute_dtype is bf16).
    """
    OC, C, KH, KW = w.shape
    K = C * KH * KW
    OC_pad = pl.cdiv(OC, LANE) * LANE
    w2 = jnp.pad(w.reshape(OC, K).astype(jnp.float32), ((0, OC_pad - OC), (0, 0)))
    w2 = w2.T.astype(compute_dtype)                                   # (K, OC_pad)
    b2 = jnp.pad(b.astype(jnp.float32), (0, OC_pad - OC)).reshape(1, OC_pad)
    return w2, b2


@functools.partial(jax.jit, static_argnames=("stride", "padding", "kh", "kw", "oc"))
def conv2d_silu(x, w2, b2, *, stride=3, padding=3, kh=7, kw=7, oc=64):
    """x: (N, C, H, W) f32; w2/b2 from prepare_params. Returns (N, OC, OH, OW) f32."""
    N, C, H, W = x.shape
    K, OC_pad = w2.shape
    assert K == C * kh * kw, (K, C, kh, kw)
    OH = (H + 2 * padding - kh) // stride + 1
    OW = (W + 2 * padding - kw) // stride + 1
    M = N * OH * OW
    compute_dtype = w2.dtype
    itemsize = jnp.dtype(compute_dtype).itemsize

    # Fused patch extraction (single XLA op). Feature dim is ordered (C, KH, KW)
    # (C slowest), which matches w.reshape(OC, K). K is left at 147 — no padding.
    patches = lax.conv_general_dilated_patches(
        x.astype(jnp.float32),
        (kh, kw),
        (stride, stride),
        ((padding, padding), (padding, padding)),
        dimension_numbers=("NCHW", "OIHW", "NHWC"),
    ).reshape(M, K).astype(compute_dtype)
    # TODO(synk): building the (tm, K) patch tile inside the kernel from a VMEM-resident
    # padded x would remove this intermediate's HBM round trip, but the C=3 / stride-3
    # im2col gather has no clean (non-relayout-heavy) Mosaic lowering today.

    # Row tile: single full-dim block for small M, else 512-row tiles over a cdiv grid
    # (ragged last block handled by Pallas edge masking; no M padding anywhere).
    tm = M if M <= TM_MAX else TM_MAX
    grid = (pl.cdiv(M, tm),)

    cost = pl.CostEstimate(
        flops=2 * M * K * OC_pad + 2 * M * OC_pad,
        transcendentals=M * OC_pad,
        bytes_accessed=M * K * itemsize + K * OC_pad * itemsize
        + OC_pad * 4 + M * OC_pad * 4,
    )

    out = pl.pallas_call(
        conv_silu_kernel,
        out_shape=jax.ShapeDtypeStruct((M, OC_pad), jnp.float32),
        grid=grid,
        in_specs=[
            pl.BlockSpec((tm, K), lambda i: (i, 0)),
            pl.BlockSpec((K, OC_pad), lambda i: (0, 0)),   # weights resident across grid
            pl.BlockSpec((1, OC_pad), lambda i: (0, 0)),   # bias resident across grid
        ],
        out_specs=pl.BlockSpec((tm, OC_pad), lambda i: (i, 0)),
        compiler_params=pltpu.CompilerParams(dimension_semantics=("parallel",)),
        cost_estimate=cost,
    )(patches, w2, b2)

    # Back to NCHW to match the PyTorch module's interface.
    # TODO(synk): drop this transpose (pure layout plumbing) if the consumer accepts NHWC.
    return out[:, :oc].reshape(N, OH, OW, oc).transpose(0, 3, 1, 2)


def reference(x, w, b, *, stride=3, padding=3):
    v1 = lax.conv_general_dilated(
        x, w, window_strides=(stride, stride),
        padding=((padding, padding), (padding, padding)),
        dimension_numbers=("NCHW", "OIHW", "NCHW"),
    ) + b.reshape(1, -1, 1, 1)
    return v1 * jax.nn.sigmoid(v1)


if __name__ == "__main__":
    # Small shapes consistent with the module: in-channels=3 fixed by the conv, spatial=32.
    N, C, H, W = 2, 3, 32, 32
    OC, KH, KW = 64, 7, 7

    key = jax.random.PRNGKey(0)
    k_x, k_w, k_b = jax.random.split(key, 3)
    x = jax.random.normal(k_x, (N, C, H, W), dtype=jnp.float32)

    # Deterministic PyTorch-like init: U(-1/sqrt(fan_in), 1/sqrt(fan_in)).
    fan_in = C * KH * KW
    bound = 1.0 / np.sqrt(fan_in)
    w = jax.random.uniform(k_w, (OC, C, KH, KW), jnp.float32, -bound, bound)
    b = jax.random.uniform(k_b, (OC,), jnp.float32, -bound, bound)

    # One-time parameter prep (not in the per-forward path).
    w2, b2 = jax.block_until_ready(prepare_params(w, b))

    out = conv2d_silu(x, w2, b2, stride=3, padding=3, kh=KH, kw=KW, oc=OC)
    out = jax.block_until_ready(out)

    ref = jax.block_until_ready(reference(x, w, b))
    assert out.shape == ref.shape, (out.shape, ref.shape)
    np.testing.assert_allclose(np.asarray(out), np.asarray(ref), rtol=1e-5, atol=1e-5)

    print("KERNEL_OK")
</pallas_src>

<mosaic_0001>
module attributes {stable_mosaic.version = 11 : i64} {
  func.func @conv_silu_kernel(%arg0: i32, %arg1: memref<242x147xf32, #tpu.memory_space<vmem>>, %arg2: memref<147x128xf32, #tpu.memory_space<vmem>>, %arg3: memref<1x128xf32, #tpu.memory_space<vmem>>, %arg4: memref<242x128xf32, #tpu.memory_space<vmem>>) attributes {dimension_semantics = [#tpu.dimension_semantics<parallel>], iteration_bounds = array<i64: 1>, scalar_prefetch = 0 : i64, scratch_operands = 0 : i64, tpu.core_type = #tpu.core_type<tc>, window_params = [{transform_indices = @transform_0, window_bounds = array<i64: 242, 147>}, {pipeline_mode = #tpu.pipeline_mode<synchronous>, transform_indices = @transform_1, window_bounds = array<i64: 147, 128>}, {pipeline_mode = #tpu.pipeline_mode<synchronous>, transform_indices = @transform_2, window_bounds = array<i64: 1, 128>}, {transform_indices = @transform_3, window_bounds = array<i64: 242, 128>}]} {
    %c0 = arith.constant 0 : index
    %c0_0 = arith.constant 0 : index
    %0 = vector.load %arg1[%c0, %c0_0] : memref<242x147xf32, #tpu.memory_space<vmem>>, vector<242x147xf32>
    %c0_1 = arith.constant 0 : index
    %c0_2 = arith.constant 0 : index
    %1 = vector.load %arg2[%c0_1, %c0_2] : memref<147x128xf32, #tpu.memory_space<vmem>>, vector<147x128xf32>
    %cst = arith.constant dense<0.000000e+00> : vector<242x128xf32>
    %2 = tpu.matmul %0, %1, %cst {dimension_numbers = #tpu.dot_dimension_numbers<[1], [0], [0], [1], [0, 0, 1, 1], [], []>} : vector<242x147xf32>, vector<147x128xf32>, vector<242x128xf32> -> vector<242x128xf32>
    %c0_3 = arith.constant 0 : index
    %c0_4 = arith.constant 0 : index
    %3 = vector.load %arg3[%c0_3, %c0_4] : memref<1x128xf32, #tpu.memory_space<vmem>>, vector<1x128xf32>
    %4 = vector.broadcast %3 : vector<1x128xf32> to vector<242x128xf32>
    %5 = arith.addf %2, %4 : vector<242x128xf32>
    %6 = arith.negf %5 : vector<242x128xf32>
    %7 = math.exp %6 : vector<242x128xf32>
    %cst_5 = arith.constant 1.000000e+00 : f32
    %8 = vector.broadcast %cst_5 : f32 to vector<242x128xf32>
    %9 = arith.addf %8, %7 : vector<242x128xf32>
    %10 = arith.divf %8, %9 : vector<242x128xf32>
    %11 = arith.mulf %5, %10 : vector<242x128xf32>
    %c0_6 = arith.constant 0 : index
    %c0_7 = arith.constant 0 : index
    %12 = vector.load %arg4[%c0_6, %c0_7] : memref<242x128xf32, #tpu.memory_space<vmem>>, vector<242x128xf32>
    tpu.vector_store %arg4[%c0_6, %c0_7], %11 {strides = array<i32>} : memref<242x128xf32, #tpu.memory_space<vmem>>, vector<242x128xf32>,
    return
  }
  func.func @transform_0(%arg0: i32) -> (i32, i32) {
    %c0_i32 = arith.constant 0 : i32
    %c0_i32_0 = arith.constant 0 : i32
    return %arg0, %c0_i32 : i32, i32
  }
  func.func @transform_1(%arg0: i32) -> (i32, i32) {
    %c0_i32 = arith.constant 0 : i32
    %c0_i32_0 = arith.constant 0 : i32
    %c0_i32_1 = arith.constant 0 : i32
    return %c0_i32, %c0_i32_0 : i32, i32
  }
  func.func @transform_2(%arg0: i32) -> (i32, i32) {
    %c0_i32 = arith.constant 0 : i32
    %c0_i32_0 = arith.constant 0 : i32
    %c0_i32_1 = arith.constant 0 : i32
    return %c0_i32, %c0_i32_0 : i32, i32
  }
  func.func @transform_3(%arg0: i32) -> (i32, i32) {
    %c0_i32 = arith.constant 0 : i32
    %c0_i32_0 = arith.constant 0 : i32
    return %arg0, %c0_i32 : i32, i32
  }
}

</mosaic_0001>

<llo_original>
// kernel: conv2d_silu.1
$region0: #{conv2d_silu.1}
  #allocation0 [shape = 'u32[]', space=smem, size = 0x4, offset = 0x4, fixed_abs, tag = 'smem constant byte address 0x4 - core index']
  #allocation1 [shape = 'u32[144,128]{1,0:T(1,128)}', space=vmem, size = 0x12000, scoped, tag = 'internal scratch']
  %s0 = inlined_call_operand.vmem [shape: f32[242,147], index: 0, kind: input, shape index: {}]
  %s1 = inlined_call_operand.vmem [shape: f32[147,128], index: 1, kind: input, shape index: {}]
  %s2 = inlined_call_operand.vmem [shape: f32[1,128], index: 2, kind: input, shape index: {}]
  %s3 = inlined_call_operand.vmem [shape: f32[242,128], index: 3, kind: output, shape index: {}]
  %s4 = sld [smem:[#allocation0]]
  $region22: #{conv2d_silu.1} parent=0
    _
  %s6 = ssub.s32 1, %s4
  %s7 = scalar_select 0, %s6, %s4
  // Predicated region
  $region2: #{conv2d_silu.1} parent=0 // pred_check
    _
  $region3: #{conv2d_silu.1} parent=0 // pred_check_branch
    %9 = sbr.rel (0) target = $region5
  $region4: #{conv2d_silu.1} parent=0 // pred_region
    _
  $region5: #{conv2d_silu.1} parent=0 // pred_fallthru
    _
  // Predicated region
  $region6: #{conv2d_silu.1} parent=0 // pred_check
    _
  $region7: #{conv2d_silu.1} parent=0 // pred_check_branch
    %11 = sbr.rel (0) target = $region9
  $region8: #{conv2d_silu.1} parent=0 // pred_region
    _
  $region9: #{conv2d_silu.1} parent=0 // pred_fallthru
    _
  // Predicated region
  $region10: #{conv2d_silu.1} parent=0 // pred_check
    _
  $region11: #{conv2d_silu.1} parent=0 // pred_check_branch
    %13 = sbr.rel (0) target = $region13
  $region12: #{conv2d_silu.1} parent=0 // pred_region
    _
  $region13: #{conv2d_silu.1} parent=0 // pred_fallthru
    _
  %v14 = vld [vmem:[%s0] sm:$0xff]
  %v15 = vld [vmem:[%s0 + $0x8] sm:$0xff]
  %v16 = vld [vmem:[%s0 + $0x10] sm:$0xff]
  %v17 = vld [vmem:[%s0 + $0x18] sm:$0xff]
  %v18 = vld [vmem:[%s0 + $0x20] sm:$0xff]
  %v19 = vld [vmem:[%s0 + $0x28] sm:$0xff]
  %v20 = vld [vmem:[%s0 + $0x30] sm:$0xff]
  %v21 = vld [vmem:[%s0 + $0x38] sm:$0xff]
  %v22 = vld [vmem:[%s0 + $0x40] sm:$0xff]
  %v23 = vld [vmem:[%s0 + $0x48] sm:$0xff]
  %v24 = vld [vmem:[%s0 + $0x50] sm:$0xff]
  %v25 = vld [vmem:[%s0 + $0x58] sm:$0xff]
  %v26 = vld [vmem:[%s0 + $0x60] sm:$0xff]
  %v27 = vld [vmem:[%s0 + $0x68] sm:$0xff]
  %v28 = vld [vmem:[%s0 + $0x70] sm:$0xff]
  %v29 = vld [vmem:[%s0 + $0x78] sm:$0xff]
  %v30 = vld [vmem:[%s0 + $0x80] sm:$0xff]
  %v31 = vld [vmem:[%s0 + $0x88] sm:$0xff]
  %v32 = vld [vmem:[%s0 + $0x90] sm:$0xff]
  %v33 = vld [vmem:[%s0 + $0x98] sm:$0xff]
  %v34 = vld [vmem:[%s0 + $0xa0] sm:$0xff]
  %v35 = vld [vmem:[%s0 + $0xa8] sm:$0xff]
  %v36 = vld [vmem:[%s0 + $0xb0] sm:$0xff]
  %v37 = vld [vmem:[%s0 + $0xb8] sm:$0xff]
  %v38 = vld [vmem:[%s0 + $0xc0] sm:$0xff]
  %v39 = vld [vmem:[%s0 + $0xc8] sm:$0xff]
  %v40 = vld [vmem:[%s0 + $0xd0] sm:$0xff]
  %v41 = vld [vmem:[%s0 + $0xd8] sm:$0xff]
  %v42 = vld [vmem:[%s0 + $0xe0] sm:$0xff]
  %v43 = vld [vmem:[%s0 + $0xe8] sm:$0xff]
  %v44 = vld [vmem:[%s0 + $0xf0] sm:$0xff]
  %v45 = vld [vmem:[%s0 + $0xf8] sm:$0xff]
  %v46 = vld [vmem:[%s0 + $0x100] sm:$0xff]
  %v47 = vld [vmem:[%s0 + $0x108] sm:$0xff]
  %v48 = vld [vmem:[%s0 + $0x110] sm:$0xff]
  %v49 = vld [vmem:[%s0 + $0x118] sm:$0xff]
  %v50 = vld [vmem:[%s0 + $0x120] sm:$0xff]
  %v51 = vld [vmem:[%s0 + $0x128] sm:$0xff]
  %v52 = vld [vmem:[%s0 + $0x130] sm:$0xff]
  %v53 = vld [vmem:[%s0 + $0x138] sm:$0xff]
  %v54 = vld [vmem:[%s0 + $0x140] sm:$0xff]
  %v55 = vld [vmem:[%s0 + $0x148] sm:$0xff]
  %v56 = vld [vmem:[%s0 + $0x150] sm:$0xff]
  %v57 = vld [vmem:[%s0 + $0x158] sm:$0xff]
  %v58 = vld [vmem:[%s0 + $0x160] sm:$0xff]
  %v59 = vld [vmem:[%s0 + $0x168] sm:$0xff]
  %v60 = vld [vmem:[%s0 + $0x170] sm:$0xff]
  %v61 = vld [vmem:[%s0 + $0x178] sm:$0xff]
  %v62 = vld [vmem:[%s0 + $0x180] sm:$0xff]
  %v63 = vld [vmem:[%s0 + $0x188] sm:$0xff]
  %v64 = vld [vmem:[%s0 + $0x190] sm:$0xff]
  %v65 = vld [vmem:[%s0 + $0x198] sm:$0xff]
  %v66 = vld [vmem:[%s0 + $0x1a0] sm:$0xff]
  %v67 = vld [vmem:[%s0 + $0x1a8] sm:$0xff]
  %v68 = vld [vmem:[%s0 + $0x1b0] sm:$0xff]
  %v69 = vld [vmem:[%s0 + $0x1b8] sm:$0xff]
  %v70 = vld [vmem:[%s0 + $0x1c0] sm:$0xff]
  %v71 = vld [vmem:[%s0 + $0x1c8] sm:$0xff]
  %v72 = vld [vmem:[%s0 + $0x1d0] sm:$0xff]
  %v73 = vld [vmem:[%s0 + $0x1d8] sm:$0xff]
  %v74 = vld [vmem:[%s0 + $0x1e0] sm:$0x3]
  %v75 = vld [vmem:[%s0 + $0x1e8] sm:$0x3]
  %v76 = vld [vmem:[%s1] sm:$0xff]
  %v77 = vld [vmem:[%s1 + $0x8] sm:$0xff]
  %v78 = vld [vmem:[%s1 + $0x10] sm:$0xff]
  %v79 = vld [vmem:[%s1 + $0x18] sm:$0xff]
  %v80 = vld [vmem:[%s1 + $0x20] sm:$0xff]
  %v81 = vld [vmem:[%s1 + $0x28] sm:$0xff]
  %v82 = vld [vmem:[%s1 + $0x30] sm:$0xff]
  %v83 = vld [vmem:[%s1 + $0x38] sm:$0xff]
  %v84 = vld [vmem:[%s1 + $0x40] sm:$0xff]
  %v85 = vld [vmem:[%s1 + $0x48] sm:$0xff]
  %v86 = vld [vmem:[%s1 + $0x50] sm:$0xff]
  %v87 = vld [vmem:[%s1 + $0x58] sm:$0xff]
  %v88 = vld [vmem:[%s1 + $0x60] sm:$0xff]
  %v89 = vld [vmem:[%s1 + $0x68] sm:$0xff]
  %v90 = vld [vmem:[%s1 + $0x70] sm:$0xff]
  %v91 = vld [vmem:[%s1 + $0x78] sm:$0xff]
  %v92 = vld [vmem:[%s1 + $0x80] sm:$0xff]
  %v93 = vld [vmem:[%s1 + $0x88] sm:$0xff]
  %v94 = vld [vmem:[%s1 + $0x90] sm:$0x7]
  %v95 = vld [vmem:[%s2] sm:$0x1]
  %v97 = vlaneseq
  %v98 = vshrl.u32 %v97, 7
  %v99 = vsub.s32 0, %v98
  %v100 = vrot.slane %v95, %v99
  %vm102 = vcmask 154624
  %v104 = vsel %vm102, %v15, 0
  %v107 = vsel %vm102, %v17, 0
  %v110 = vsel %vm102, %v19, 0
  %v113 = vsel %vm102, %v21, 0
  %v116 = vsel %vm102, %v23, 0
  %v119 = vsel %vm102, %v25, 0
  %v122 = vsel %vm102, %v27, 0
  %v125 = vsel %vm102, %v29, 0
  %v128 = vsel %vm102, %v31, 0
  %v131 = vsel %vm102, %v33, 0
  %v134 = vsel %vm102, %v35, 0
  %v137 = vsel %vm102, %v37, 0
  %v140 = vsel %vm102, %v39, 0
  %v143 = vsel %vm102, %v41, 0
  %v146 = vsel %vm102, %v43, 0
  %v149 = vsel %vm102, %v45, 0
  %v152 = vsel %vm102, %v47, 0
  %v155 = vsel %vm102, %v49, 0
  %v158 = vsel %vm102, %v51, 0
  %v161 = vsel %vm102, %v53, 0
  %v164 = vsel %vm102, %v55, 0
  %v167 = vsel %vm102, %v57, 0
  %v170 = vsel %vm102, %v59, 0
  %v173 = vsel %vm102, %v61, 0
  %v176 = vsel %vm102, %v63, 0
  %v179 = vsel %vm102, %v65, 0
  %v182 = vsel %vm102, %v67, 0
  %v185 = vsel %vm102, %v69, 0
  %v188 = vsel %vm102, %v71, 0
  %v191 = vsel %vm102, %v73, 0
  %v194 = vsel %vm102, %v75, 0
  %vm196 = vcmask 1042432
  %v198 = vsel %vm196, %v94, 0
  %200 = vmatprep.subr.mxu0 0.0
  %201 = vmatpush1.msra.mxu0 %v76
  %202 = vmatprep.subr.mxu0 0.0
  %203 = vmatpush1.msra.mxu0 %v77
  %204 = vmatprep.subr.mxu0 0.0
  %205 = vmatpush1.msra.mxu0 %v78
  %206 = vmatprep.subr.mxu0 0.0
  %207 = vmatpush1.msra.mxu0 %v79
  %208 = vmatprep.subr.mxu0 0.0
  %209 = vmatpush1.msra.mxu0 %v80
  %210 = vmatprep.subr.mxu0 0.0
  %211 = vmatpush1.msra.mxu0 %v81
  %212 = vmatprep.subr.mxu0 0.0
  %213 = vmatpush1.msra.mxu0 %v82
  %214 = vmatprep.subr.mxu0 0.0
  %215 = vmatpush1.msra.mxu0 %v83
  %216 = vmatprep.subr.mxu0 0.0
  %217 = vmatpush1.msra.mxu0 %v84
  %218 = vmatprep.subr.mxu0 0.0
  %219 = vmatpush1.msra.mxu0 %v85
  %220 = vmatprep.subr.mxu0 0.0
  %221 = vmatpush1.msra.mxu0 %v86
  %222 = vmatprep.subr.mxu0 0.0
  %223 = vmatpush1.msra.mxu0 %v87
  %224 = vmatprep.subr.mxu0 0.0
  %225 = vmatpush1.msra.mxu0 %v88
  %226 = vmatprep.subr.mxu0 0.0
  %227 = vmatpush1.msra.mxu0 %v89
  %228 = vmatprep.subr.mxu0 0.0
  %229 = vmatpush1.msra.mxu0 %v90
  %230 = vmatprep.subr.mxu0 0.0
  %231 = vmatpush1.msra.mxu0 %v91
  %232 = vmatprep.subr.mxu0 0.0
  %233 = vmatpush1.msra.mxu0 %v92
  %234 = vmatprep.subr.mxu0 0.0
  %235 = vmatpush1.msra.mxu0 %v93
  %236 = vmatprep.subr.mxu0 0.0
  %237 = vmatpush1.msra.mxu0 %v198
  %238 = vmatprep.subr.mxu0 0.0
  %239 = vmatpush1.msra.mxu0 0.0
  %240 = vmatprep.subr.mxu0 0.0
  %241 = vmatpush1.msra.mxu0 0.0
  %242 = vmatprep.subr.mxu0 0.0
  %243 = vmatpush1.msra.mxu0 0.0
  %244 = vmatprep.subr.mxu0 0.0
  %245 = vmatpush1.msra.mxu0 0.0
  %246 = vmatprep.subr.mxu0 0.0
  %247 = vmatpush1.msra.mxu0 0.0
  %248 = vmatprep.subr.mxu0 0.0
  %249 = vmatpush1.msra.mxu0 0.0
  %250 = vmatprep.subr.mxu0 0.0
  %251 = vmatpush1.msra.mxu0 0.0
  %252 = vmatprep.subr.mxu0 0.0
  %253 = vmatpush1.msra.mxu0 0.0
  %254 = vmatprep.subr.mxu0 0.0
  %255 = vmatpush1.msra.mxu0 0.0
  %256 = vmatprep.subr.mxu0 0.0
  %257 = vmatpush1.msra.mxu0 0.0
  %258 = vmatprep.subr.mxu0 0.0
  %259 = vmatpush1.msra.mxu0 0.0
  %260 = vmatprep.subr.mxu0 0.0
  %261 = vmatpush1.msra.mxu0 0.0
  %262 = vmatprep.subr.mxu0 0.0
  %263 = vmatpush1.msra.mxu0 0.0
  %264 = vmatprep.mubr.f32.mxu0 %v104
  %265 = vmatmul.mubr.f32.gmra.mrb[0].mxu0 %v14
  %v266 = vpop.f32.mrb[0].mxu0
  %v267 = vadd.f32 %v100, %v266
  %v268 = vpop.f32.mrb[0].mxu0
  %269 = vmatprep.mubr.f32.mxu0 %v107
  %270 = vmatmul.mubr.f32.gmra.mrb[0].mxu0 %v16
  %v271 = vpop.f32.mrb[0].mxu0
  %v272 = vadd.f32 %v100, %v271
  %v273 = vpop.f32.mrb[0].mxu0
  %274 = vmatprep.mubr.f32.mxu0 %v110
  %275 = vmatmul.mubr.f32.gmra.mrb[0].mxu0 %v18
  %v276 = vpop.f32.mrb[0].mxu0
  %v277 = vadd.f32 %v100, %v276
  %v278 = vpop.f32.mrb[0].mxu0
  %279 = vmatprep.mubr.f32.mxu0 %v113
  %280 = vmatmul.mubr.f32.gmra.mrb[0].mxu0 %v20
  %v281 = vpop.f32.mrb[0].mxu0
  %v282 = vadd.f32 %v100, %v281
  %v283 = vpop.f32.mrb[0].mxu0
  %284 = vmatprep.mubr.f32.mxu0 %v116
  %285 = vmatmul.mubr.f32.gmra.mrb[0].mxu0 %v22
  %v286 = vpop.f32.mrb[0].mxu0
  %v287 = vadd.f32 %v100, %v286
  %v288 = vpop.f32.mrb[0].mxu0
  %289 = vmatprep.mubr.f32.mxu0 %v119
  %290 = vmatmul.mubr.f32.gmra.mrb[0].mxu0 %v24
  %v291 = vpop.f32.mrb[0].mxu0
  %v292 = vadd.f32 %v100, %v291
  %v293 = vpop.f32.mrb[0].mxu0
  %294 = vmatprep.mubr.f32.mxu0 %v122
  %295 = vmatmul.mubr.f32.gmra.mrb[0].mxu0 %v26
  %v296 = vpop.f32.mrb[0].mxu0
  %v297 = vadd.f32 %v100, %v296
  %v298 = vpop.f32.mrb[0].mxu0
  %299 = vmatprep.mubr.f32.mxu0 %v125
  %300 = vmatmul.mubr.f32.gmra.mrb[0].mxu0 %v28
  %v301 = vpop.f32.mrb[0].mxu0
  %v302 = vadd.f32 %v100, %v301
  %v303 = vpop.f32.mrb[0].mxu0
  %304 = vmatprep.mubr.f32.mxu0 %v128
  %305 = vmatmul.mubr.f32.gmra.mrb[0].mxu0 %v30
  %v306 = vpop.f32.mrb[0].mxu0
  %v307 = vadd.f32 %v100, %v306
  %v308 = vpop.f32.mrb[0].mxu0
  %309 = vmatprep.mubr.f32.mxu0 %v131
  %310 = vmatmul.mubr.f32.gmra.mrb[0].mxu0 %v32
  %v311 = vpop.f32.mrb[0].mxu0
  %v312 = vadd.f32 %v100, %v311
  %v313 = vpop.f32.mrb[0].mxu0
  %314 = vmatprep.mubr.f32.mxu0 %v134
  %315 = vmatmul.mubr.f32.gmra.mrb[0].mxu0 %v34
  %v316 = vpop.f32.mrb[0].mxu0
  %v317 = vadd.f32 %v100, %v316
  %v318 = vpop.f32.mrb[0].mxu0
  %319 = vmatprep.mubr.f32.mxu0 %v137
  %320 = vmatmul.mubr.f32.gmra.mrb[0].mxu0 %v36
  %v321 = vpop.f32.mrb[0].mxu0
  %v322 = vadd.f32 %v100, %v321
  %v323 = vpop.f32.mrb[0].mxu0
  %324 = vmatprep.mubr.f32.mxu0 %v140
  %325 = vmatmul.mubr.f32.gmra.mrb[0].mxu0 %v38
  %v326 = vpop.f32.mrb[0].mxu0
  %v327 = vadd.f32 %v100, %v326
  %v328 = vpop.f32.mrb[0].mxu0
  %329 = vmatprep.mubr.f32.mxu0 %v143
  %330 = vmatmul.mubr.f32.gmra.mrb[0].mxu0 %v40
  %v331 = vpop.f32.mrb[0].mxu0
  %v332 = vadd.f32 %v100, %v331
  %v333 = vpop.f32.mrb[0].mxu0
  %334 = vmatprep.mubr.f32.mxu0 %v146
  %335 = vmatmul.mubr.f32.gmra.mrb[0].mxu0 %v42
  %v336 = vpop.f32.mrb[0].mxu0
  %v337 = vadd.f32 %v100, %v336
  %v338 = vpop.f32.mrb[0].mxu0
  %339 = vmatprep.mubr.f32.mxu0 %v149
  %340 = vmatmul.mubr.f32.gmra.mrb[0].mxu0 %v44
  %v341 = vpop.f32.mrb[0].mxu0
  %v342 = vadd.f32 %v100, %v341
  %v343 = vpop.f32.mrb[0].mxu0
  %344 = vmatprep.mubr.f32.mxu0 %v152
  %345 = vmatmul.mubr.f32.gmra.mrb[0].mxu0 %v46
  %v346 = vpop.f32.mrb[0].mxu0
  %v347 = vadd.f32 %v100, %v346
  %v348 = vpop.f32.mrb[0].mxu0
  %349 = vmatprep.mubr.f32.mxu0 %v155
  %350 = vmatmul.mubr.f32.gmra.mrb[0].mxu0 %v48
  %v351 = vpop.f32.mrb[0].mxu0
  %v352 = vadd.f32 %v100, %v351
  %v353 = vpop.f32.mrb[0].mxu0
  %354 = vmatprep.mubr.f32.mxu0 %v158
  %355 = vmatmul.mubr.f32.gmra.mrb[0].mxu0 %v50
  %v356 = vpop.f32.mrb[0].mxu0
  %v357 = vadd.f32 %v100, %v356
  %v358 = vpop.f32.mrb[0].mxu0
  %359 = vmatprep.mubr.f32.mxu0 %v161
  %360 = vmatmul.mubr.f32.gmra.mrb[0].mxu0 %v52
  %v361 = vpop.f32.mrb[0].mxu0
  %v362 = vadd.f32 %v100, %v361
  %v363 = vpop.f32.mrb[0].mxu0
  %364 = vmatprep.mubr.f32.mxu0 %v164
  %365 = vmatmul.mubr.f32.gmra.mrb[0].mxu0 %v54
  %v366 = vpop.f32.mrb[0].mxu0
  %v367 = vadd.f32 %v100, %v366
  %v368 = vpop.f32.mrb[0].mxu0
  %369 = vmatprep.mubr.f32.mxu0 %v167
  %370 = vmatmul.mubr.f32.gmra.mrb[0].mxu0 %v56
  %v371 = vpop.f32.mrb[0].mxu0
  %v372 = vadd.f32 %v100, %v371
  %v373 = vpop.f32.mrb[0].mxu0
  %374 = vmatprep.mubr.f32.mxu0 %v170
  %375 = vmatmul.mubr.f32.gmra.mrb[0].mxu0 %v58
  %v376 = vpop.f32.mrb[0].mxu0
  %v377 = vadd.f32 %v100, %v376
  %v378 = vpop.f32.mrb[0].mxu0
  %379 = vmatprep.mubr.f32.mxu0 %v173
  %380 = vmatmul.mubr.f32.gmra.mrb[0].mxu0 %v60
  %v381 = vpop.f32.mrb[0].mxu0
  %v382 = vadd.f32 %v100, %v381
  %v383 = vpop.f32.mrb[0].mxu0
  %384 = vmatprep.mubr.f32.mxu0 %v176
  %385 = vmatmul.mubr.f32.gmra.mrb[0].mxu0 %v62
  %v386 = vpop.f32.mrb[0].mxu0
  %v387 = vadd.f32 %v100, %v386
  %v388 = vpop.f32.mrb[0].mxu0
  %389 = vmatprep.mubr.f32.mxu0 %v179
  %390 = vmatmul.mubr.f32.gmra.mrb[0].mxu0 %v64
  %v391 = vpop.f32.mrb[0].mxu0
  %v392 = vadd.f32 %v100, %v391
  %v393 = vpop.f32.mrb[0].mxu0
  %394 = vmatprep.mubr.f32.mxu0 %v182
  %395 = vmatmul.mubr.f32.gmra.mrb[0].mxu0 %v66
  %v396 = vpop.f32.mrb[0].mxu0
  %v397 = vadd.f32 %v100, %v396
  %v398 = vpop.f32.mrb[0].mxu0
  %399 = vmatprep.mubr.f32.mxu0 %v185
  %400 = vmatmul.mubr.f32.gmra.mrb[0].mxu0 %v68
  %v401 = vpop.f32.mrb[0].mxu0
  %v402 = vadd.f32 %v100, %v401
  %v403 = vpop.f32.mrb[0].mxu0
  %404 = vmatprep.mubr.f32.mxu0 %v188
  %405 = vmatmul.mubr.f32.gmra.mrb[0].mxu0 %v70
  %v406 = vpop.f32.mrb[0].mxu0
  %v407 = vadd.f32 %v100, %v406
  %v408 = vpop.f32.mrb[0].mxu0
  %409 = vmatprep.mubr.f32.mxu0 %v191
  %410 = vmatmul.mubr.f32.gmra.mrb[0].mxu0 %v72
  %v411 = vpop.f32.mrb[0].mxu0
  %v412 = vadd.f32 %v100, %v411
  %v413 = vpop.f32.mrb[0].mxu0
  %414 = vmatprep.mubr.f32.mxu0 %v194
  %415 = vmatmul.mubr.f32.gmra.mrb[0].mxu0 %v74
  %v416 = vpop.f32.mrb[0].mxu0
  %v417 = vadd.f32 %v100, %v416
  %v418 = vpop.f32.mrb[0].mxu0
  %419 = vdwg.mxu0
  %v420 = vxor.u32 %v267, 2147483648
  %v421 = vxor.u32 %v272, 2147483648
  %v422 = vxor.u32 %v277, 2147483648
  %v423 = vxor.u32 %v282, 2147483648
  %v424 = vxor.u32 %v287, 2147483648
  %v425 = vxor.u32 %v292, 2147483648
  %v426 = vxor.u32 %v297, 2147483648
  %v427 = vxor.u32 %v302, 2147483648
  %v428 = vxor.u32 %v307, 2147483648
  %v429 = vxor.u32 %v312, 2147483648
  %v430 = vxor.u32 %v317, 2147483648
  %v431 = vxor.u32 %v322, 2147483648
  %v432 = vxor.u32 %v327, 2147483648
  %v433 = vxor.u32 %v332, 2147483648
  %v434 = vxor.u32 %v337, 2147483648
  %v435 = vxor.u32 %v342, 2147483648
  %v436 = vxor.u32 %v347, 2147483648
  %v437 = vxor.u32 %v352, 2147483648
  %v438 = vxor.u32 %v357, 2147483648
  %v439 = vxor.u32 %v362, 2147483648
  %v440 = vxor.u32 %v367, 2147483648
  %v441 = vxor.u32 %v372, 2147483648
  %v442 = vxor.u32 %v377, 2147483648
  %v443 = vxor.u32 %v382, 2147483648
  %v444 = vxor.u32 %v387, 2147483648
  %v445 = vxor.u32 %v392, 2147483648
  %v446 = vxor.u32 %v397, 2147483648
  %v447 = vxor.u32 %v402, 2147483648
  %v448 = vxor.u32 %v407, 2147483648
  %v449 = vxor.u32 %v412, 2147483648
  %v450 = vxor.u32 %v417, 2147483648
  %v451 = vmul.f32 %v420, 1.442695
  %v452 = vpow.pop %v451
  %v453 = vmul.f32 %v421, 1.442695
  %v454 = vpow.pop %v453
  %v455 = vmul.f32 %v422, 1.442695
  %v456 = vpow.pop %v455
  %v457 = vmul.f32 %v423, 1.442695
  %v458 = vpow.pop %v457
  %v459 = vmul.f32 %v424, 1.442695
  %v460 = vpow.pop %v459
  %v461 = vmul.f32 %v425, 1.442695
  %v462 = vpow.pop %v461
  %v463 = vmul.f32 %v426, 1.442695
  %v464 = vpow.pop %v463
  %v465 = vmul.f32 %v427, 1.442695
  %v466 = vpow.pop %v465
  %v467 = vmul.f32 %v428, 1.442695
  %v468 = vpow.pop %v467
  %v469 = vmul.f32 %v429, 1.442695
  %v470 = vpow.pop %v469
  %v471 = vmul.f32 %v430, 1.442695
  %v472 = vpow.pop %v471
  %v473 = vmul.f32 %v431, 1.442695
  %v474 = vpow.pop %v473
  %v475 = vmul.f32 %v432, 1.442695
  %v476 = vpow.pop %v475
  %v477 = vmul.f32 %v433, 1.442695
  %v478 = vpow.pop %v477
  %v479 = vmul.f32 %v434, 1.442695
  %v480 = vpow.pop %v479
  %v481 = vmul.f32 %v435, 1.442695
  %v482 = vpow.pop %v481
  %v483 = vmul.f32 %v436, 1.442695
  %v484 = vpow.pop %v483
  %v485 = vmul.f32 %v437, 1.442695
  %v486 = vpow.pop %v485
  %v487 = vmul.f32 %v438, 1.442695
  %v488 = vpow.pop %v487
  %v489 = vmul.f32 %v439, 1.442695
  %v490 = vpow.pop %v489
  %v491 = vmul.f32 %v440, 1.442695
  %v492 = vpow.pop %v491
  %v493 = vmul.f32 %v441, 1.442695
  %v494 = vpow.pop %v493
  %v495 = vmul.f32 %v442, 1.442695
  %v496 = vpow.pop %v495
  %v497 = vmul.f32 %v443, 1.442695
  %v498 = vpow.pop %v497
  %v499 = vmul.f32 %v444, 1.442695
  %v500 = vpow.pop %v499
  %v501 = vmul.f32 %v445, 1.442695
  %v502 = vpow.pop %v501
  %v503 = vmul.f32 %v446, 1.442695
  %v504 = vpow.pop %v503
  %v505 = vmul.f32 %v447, 1.442695
  %v506 = vpow.pop %v505
  %v507 = vmul.f32 %v448, 1.442695
  %v508 = vpow.pop %v507
  %v509 = vmul.f32 %v449, 1.442695
  %v510 = vpow.pop %v509
  %v511 = vmul.f32 %v450, 1.442695
  %v512 = vpow.pop %v511
  %v513 = vadd.f32 %v452, 1.0
  %v514 = vadd.f32 %v454, 1.0
  %v515 = vadd.f32 %v456, 1.0
  %v516 = vadd.f32 %v458, 1.0
  %v517 = vadd.f32 %v460, 1.0
  %v518 = vadd.f32 %v462, 1.0
  %v519 = vadd.f32 %v464, 1.0
  %v520 = vadd.f32 %v466, 1.0
  %v521 = vadd.f32 %v468, 1.0
  %v522 = vadd.f32 %v470, 1.0
  %v523 = vadd.f32 %v472, 1.0
  %v524 = vadd.f32 %v474, 1.0
  %v525 = vadd.f32 %v476, 1.0
  %v526 = vadd.f32 %v478, 1.0
  %v527 = vadd.f32 %v480, 1.0
  %v528 = vadd.f32 %v482, 1.0
  %v529 = vadd.f32 %v484, 1.0
  %v530 = vadd.f32 %v486, 1.0
  %v531 = vadd.f32 %v488, 1.0
  %v532 = vadd.f32 %v490, 1.0
  %v533 = vadd.f32 %v492, 1.0
  %v534 = vadd.f32 %v494, 1.0
  %v535 = vadd.f32 %v496, 1.0
  %v536 = vadd.f32 %v498, 1.0
  %v537 = vadd.f32 %v500, 1.0
  %v538 = vadd.f32 %v502, 1.0
  %v539 = vadd.f32 %v504, 1.0
  %v540 = vadd.f32 %v506, 1.0
  %v541 = vadd.f32 %v508, 1.0
  %v542 = vadd.f32 %v510, 1.0
  %v543 = vadd.f32 %v512, 1.0
  %v544 = vrcp.pop %v513
  %v545 = vmul.f32 1.0, %v544
  %v546 = vrcp.pop %v514
  %v547 = vmul.f32 1.0, %v546
  %v548 = vrcp.pop %v515
  %v549 = vmul.f32 1.0, %v548
  %v550 = vrcp.pop %v516
  %v551 = vmul.f32 1.0, %v550
  %v552 = vrcp.pop %v517
  %v553 = vmul.f32 1.0, %v552
  %v554 = vrcp.pop %v518
  %v555 = vmul.f32 1.0, %v554
  %v556 = vrcp.pop %v519
  %v557 = vmul.f32 1.0, %v556
  %v558 = vrcp.pop %v520
  %v559 = vmul.f32 1.0, %v558
  %v560 = vrcp.pop %v521
  %v561 = vmul.f32 1.0, %v560
  %v562 = vrcp.pop %v522
  %v563 = vmul.f32 1.0, %v562
  %v564 = vrcp.pop %v523
  %v565 = vmul.f32 1.0, %v564
  %v566 = vrcp.pop %v524
  %v567 = vmul.f32 1.0, %v566
  %v568 = vrcp.pop %v525
  %v569 = vmul.f32 1.0, %v568
  %v570 = vrcp.pop %v526
  %v571 = vmul.f32 1.0, %v570
  %v572 = vrcp.pop %v527
  %v573 = vmul.f32 1.0, %v572
  %v574 = vrcp.pop %v528
  %v575 = vmul.f32 1.0, %v574
  %v576 = vrcp.pop %v529
  %v577 = vmul.f32 1.0, %v576
  %v578 = vrcp.pop %v530
  %v579 = vmul.f32 1.0, %v578
  %v580 = vrcp.pop %v531
  %v581 = vmul.f32 1.0, %v580
  %v582 = vrcp.pop %v532
  %v583 = vmul.f32 1.0, %v582
  %v584 = vrcp.pop %v533
  %v585 = vmul.f32 1.0, %v584
  %v586 = vrcp.pop %v534
  %v587 = vmul.f32 1.0, %v586
  %v588 = vrcp.pop %v535
  %v589 = vmul.f32 1.0, %v588
  %v590 = vrcp.pop %v536
  %v591 = vmul.f32 1.0, %v590
  %v592 = vrcp.pop %v537
  %v593 = vmul.f32 1.0, %v592
  %v594 = vrcp.pop %v538
  %v595 = vmul.f32 1.0, %v594
  %v596 = vrcp.pop %v539
  %v597 = vmul.f32 1.0, %v596
  %v598 = vrcp.pop %v540
  %v599 = vmul.f32 1.0, %v598
  %v600 = vrcp.pop %v541
  %v601 = vmul.f32 1.0, %v600
  %v602 = vrcp.pop %v542
  %v603 = vmul.f32 1.0, %v602
  %v604 = vrcp.pop %v543
  %v605 = vmul.f32 1.0, %v604
  %v606 = vmul.f32 %v267, %v545
  %v607 = vmul.f32 %v272, %v547
  %v608 = vmul.f32 %v277, %v549
  %v609 = vmul.f32 %v282, %v551
  %v610 = vmul.f32 %v287, %v553
  %v611 = vmul.f32 %v292, %v555
  %v612 = vmul.f32 %v297, %v557
  %v613 = vmul.f32 %v302, %v559
  %v614 = vmul.f32 %v307, %v561
  %v615 = vmul.f32 %v312, %v563
  %v616 = vmul.f32 %v317, %v565
  %v617 = vmul.f32 %v322, %v567
  %v618 = vmul.f32 %v327, %v569
  %v619 = vmul.f32 %v332, %v571
  %v620 = vmul.f32 %v337, %v573
  %v621 = vmul.f32 %v342, %v575
  %v622 = vmul.f32 %v347, %v577
  %v623 = vmul.f32 %v352, %v579
  %v624 = vmul.f32 %v357, %v581
  %v625 = vmul.f32 %v362, %v583
  %v626 = vmul.f32 %v367, %v585
  %v627 = vmul.f32 %v372, %v587
  %v628 = vmul.f32 %v377, %v589
  %v629 = vmul.f32 %v382, %v591
  %v630 = vmul.f32 %v387, %v593
  %v631 = vmul.f32 %v392, %v595
  %v632 = vmul.f32 %v397, %v597
  %v633 = vmul.f32 %v402, %v599
  %v634 = vmul.f32 %v407, %v601
  %v635 = vmul.f32 %v412, %v603
  %v636 = vmul.f32 %v417, %v605
  %637 = vst [vmem:[%s3] sm:$0xff] %v606
  %638 = vst [vmem:[%s3 + $0x8] sm:$0xff] %v607
  %639 = vst [vmem:[%s3 + $0x10] sm:$0xff] %v608
  %640 = vst [vmem:[%s3 + $0x18] sm:$0xff] %v609
  %641 = vst [vmem:[%s3 + $0x20] sm:$0xff] %v610
  %642 = vst [vmem:[%s3 + $0x28] sm:$0xff] %v611
  %643 = vst [vmem:[%s3 + $0x30] sm:$0xff] %v612
  %644 = vst [vmem:[%s3 + $0x38] sm:$0xff] %v613
  %645 = vst [vmem:[%s3 + $0x40] sm:$0xff] %v614
  %646 = vst [vmem:[%s3 + $0x48] sm:$0xff] %v615
  %647 = vst [vmem:[%s3 + $0x50] sm:$0xff] %v616
  %648 = vst [vmem:[%s3 + $0x58] sm:$0xff] %v617
  %649 = vst [vmem:[%s3 + $0x60] sm:$0xff] %v618
  %650 = vst [vmem:[%s3 + $0x68] sm:$0xff] %v619
  %651 = vst [vmem:[%s3 + $0x70] sm:$0xff] %v620
  %652 = vst [vmem:[%s3 + $0x78] sm:$0xff] %v621
  %653 = vst [vmem:[%s3 + $0x80] sm:$0xff] %v622
  %654 = vst [vmem:[%s3 + $0x88] sm:$0xff] %v623
  %655 = vst [vmem:[%s3 + $0x90] sm:$0xff] %v624
  %656 = vst [vmem:[%s3 + $0x98] sm:$0xff] %v625
  %657 = vst [vmem:[%s3 + $0xa0] sm:$0xff] %v626
  %658 = vst [vmem:[%s3 + $0xa8] sm:$0xff] %v627
  %659 = vst [vmem:[%s3 + $0xb0] sm:$0xff] %v628
  %660 = vst [vmem:[%s3 + $0xb8] sm:$0xff] %v629
  %661 = vst [vmem:[%s3 + $0xc0] sm:$0xff] %v630
  %662 = vst [vmem:[%s3 + $0xc8] sm:$0xff] %v631
  %663 = vst [vmem:[%s3 + $0xd0] sm:$0xff] %v632
  %664 = vst [vmem:[%s3 + $0xd8] sm:$0xff] %v633
  %665 = vst [vmem:[%s3 + $0xe0] sm:$0xff] %v634
  %666 = vst [vmem:[%s3 + $0xe8] sm:$0xff] %v635
  %667 = vst [vmem:[%s3 + $0xf0] sm:$0x3] %v636
  // Predicated region
  $region14: #{conv2d_silu.1} parent=0 // pred_check
    _
  $region15: #{conv2d_silu.1} parent=0 // pred_check_branch
    %669 = sbr.rel (0) target = $region17
  $region16: #{conv2d_silu.1} parent=0 // pred_region
    _
  $region17: #{conv2d_silu.1} parent=0 // pred_fallthru
    _
  // Predicated region
  $region18: #{conv2d_silu.1} parent=0 // pred_check
    _
  $region19: #{conv2d_silu.1} parent=0 // pred_check_branch
    %671 = sbr.rel (0) target = $region21
  $region20: #{conv2d_silu.1} parent=0 // pred_region
    _
  $region21: #{conv2d_silu.1} parent=0 // pred_fallthru
    _

</llo_original>
